<compile_context>
chip_gen: v7x
topology: tpu7x:2x2x1
jax: 0.10.0
libtpu: 0.0.40
codegen_flags: <defaults>
</compile_context>

<pallas_src>
import functools
import math

import jax
import jax.numpy as jnp
from jax.experimental import pallas as pl
from jax.experimental.pallas import tpu as pltpu

LN_EPS = 1e-12                      # BERT layer-norm epsilon
_SQRT_2_OVER_PI = 0.7978845608028654


@functools.lru_cache(maxsize=None)
def _vmem_limit_bytes():
    """Per-generation scoped-VMEM limit: half of physical capacity."""
    cap = 128 * 1024 * 1024
    try:
        info = pltpu.get_tpu_info()
        cap = int(getattr(info, "vmem_capacity_bytes", cap))
    except Exception:
        pass
    return min(cap // 2, 100 * 1024 * 1024)


def _tile(dim, target, align):
    """Largest `align`-multiple tile <= target that divides dim, else full dim.

    Returning the full dim is always BlockSpec-legal (block == array extent),
    so we never emit tiny/unaligned tiles that would force masked stores.
    """
    if dim <= target:
        return dim
    t = (target // align) * align
    while t >= align:
        if dim % t == 0:
            return t
        t -= align
    return dim


def _apply_activation(y, activation):
    if activation == "gelu":
        # tanh-approx GELU (EUP path); ~1e-3 from exact erf GELU.
        return 0.5 * y * (1.0 + jnp.tanh(_SQRT_2_OVER_PI * (y + 0.044715 * y * y * y)))
    if activation == "tanh":
        return jnp.tanh(y)
    return y


# ---------------------------------------------------------------------------
# Tiled linear (+ optional activation epilogue).  bf16 operands, f32 acc,
# bf16 output.
# ---------------------------------------------------------------------------
def _matmul_kernel(x_ref, w_ref, b_ref, o_ref, acc_ref, *, activation):
    @pl.when(pl.program_id(2) == 0)
    def _():
        acc_ref[...] = jnp.zeros_like(acc_ref)

    acc_ref[...] += jnp.dot(x_ref[...], w_ref[...],
                            preferred_element_type=jnp.float32)

    @pl.when(pl.program_id(2) == pl.num_programs(2) - 1)
    def _():
        y = acc_ref[...] + b_ref[...]
        o_ref[...] = _apply_activation(y, activation).astype(o_ref.dtype)


def linear(x, w, b, activation="none", *, tm=512, tn=256, tk=512):
    M, K = x.shape
    N = w.shape[1]
    tm = _tile(M, tm, 8)
    tn = _tile(N, tn, 128)
    tk = _tile(K, tk, 128)
    kernel = functools.partial(_matmul_kernel, activation=activation)
    return pl.pallas_call(
        kernel,
        out_shape=jax.ShapeDtypeStruct((M, N), jnp.bfloat16),
        grid=(M // tm, N // tn, K // tk),
        in_specs=[
            pl.BlockSpec((tm, tk), lambda i, j, k: (i, k)),
            pl.BlockSpec((tk, tn), lambda i, j, k: (k, j)),
            pl.BlockSpec((1, tn), lambda i, j, k: (0, j)),
        ],
        out_specs=pl.BlockSpec((tm, tn), lambda i, j, k: (i, j)),
        scratch_shapes=[pltpu.VMEM((tm, tn), jnp.float32)],
        compiler_params=pltpu.CompilerParams(
            dimension_semantics=("parallel", "parallel", "arbitrary"),
            vmem_limit_bytes=_vmem_limit_bytes()),
    )(x, w, b.reshape(1, N).astype(jnp.float32))


# ---------------------------------------------------------------------------
# Fused Q/K/V projection: one pallas_call, shared x tile, three outputs.
# Avoids any JAX-side column-slice copies of a (B*T, 3D) tensor.
# ---------------------------------------------------------------------------
def _qkv_matmul_kernel(x_ref, wq_ref, wk_ref, wv_ref, bq_ref, bk_ref, bv_ref,
                       q_out, k_out, v_out, accq, acck, accv):
    @pl.when(pl.program_id(2) == 0)
    def _():
        accq[...] = jnp.zeros_like(accq)
        acck[...] = jnp.zeros_like(acck)
        accv[...] = jnp.zeros_like(accv)

    x = x_ref[...]
    accq[...] += jnp.dot(x, wq_ref[...], preferred_element_type=jnp.float32)
    acck[...] += jnp.dot(x, wk_ref[...], preferred_element_type=jnp.float32)
    accv[...] += jnp.dot(x, wv_ref[...], preferred_element_type=jnp.float32)

    @pl.when(pl.program_id(2) == pl.num_programs(2) - 1)
    def _():
        q_out[...] = (accq[...] + bq_ref[...]).astype(q_out.dtype)
        k_out[...] = (acck[...] + bk_ref[...]).astype(k_out.dtype)
        v_out[...] = (accv[...] + bv_ref[...]).astype(v_out.dtype)


def linear_qkv(x, wq, wk, wv, bq, bk, bv, *, tm=512, tn=256, tk=512):
    M, K = x.shape
    N = wq.shape[1]
    tm = _tile(M, tm, 8)
    tn = _tile(N, tn, 128)
    tk = _tile(K, tk, 128)
    x_spec = pl.BlockSpec((tm, tk), lambda i, j, k: (i, k))
    w_spec = pl.BlockSpec((tk, tn), lambda i, j, k: (k, j))
    b_spec = pl.BlockSpec((1, tn), lambda i, j, k: (0, j))
    o_spec = pl.BlockSpec((tm, tn), lambda i, j, k: (i, j))
    out = jax.ShapeDtypeStruct((M, N), jnp.bfloat16)
    return pl.pallas_call(
        _qkv_matmul_kernel,
        out_shape=(out, out, out),
        grid=(M // tm, N // tn, K // tk),
        in_specs=[x_spec, w_spec, w_spec, w_spec, b_spec, b_spec, b_spec],
        out_specs=(o_spec, o_spec, o_spec),
        scratch_shapes=[pltpu.VMEM((tm, tn), jnp.float32),
                        pltpu.VMEM((tm, tn), jnp.float32),
                        pltpu.VMEM((tm, tn), jnp.float32)],
        compiler_params=pltpu.CompilerParams(
            dimension_semantics=("parallel", "parallel", "arbitrary"),
            vmem_limit_bytes=_vmem_limit_bytes()),
    )(x, wq, wk, wv,
      bq.reshape(1, N).astype(jnp.float32),
      bk.reshape(1, N).astype(jnp.float32),
      bv.reshape(1, N).astype(jnp.float32))


# ---------------------------------------------------------------------------
# Tiled linear fused with bias + residual add + LayerNorm epilogue.
# Output feature dim N == D stays a single block so LN sees full rows.
# ---------------------------------------------------------------------------
def _linear_res_ln_kernel(x_ref, w_ref, b_ref, r_ref, g_ref, be_ref, o_ref, acc_ref):
    @pl.when(pl.program_id(1) == 0)
    def _():
        acc_ref[...] = jnp.zeros_like(acc_ref)

    acc_ref[...] += jnp.dot(x_ref[...], w_ref[...],
                            preferred_element_type=jnp.float32)

    @pl.when(pl.program_id(1) == pl.num_programs(1) - 1)
    def _():
        y = acc_ref[...] + b_ref[...] + r_ref[...].astype(jnp.float32)
        mean = jnp.mean(y, axis=-1, keepdims=True)
        c = y - mean
        var = jnp.mean(c * c, axis=-1, keepdims=True)
        inv = jax.lax.rsqrt(var + LN_EPS)
        o_ref[...] = (c * inv * g_ref[...] + be_ref[...]).astype(o_ref.dtype)


def linear_residual_layernorm(x, w, b, res, gamma, beta, *, tm=512, tk=512):
    M, K = x.shape
    N = w.shape[1]
    tm = _tile(M, tm, 8)
    tk = _tile(K, tk, 128)
    return pl.pallas_call(
        _linear_res_ln_kernel,
        out_shape=jax.ShapeDtypeStruct((M, N), jnp.bfloat16),
        grid=(M // tm, K // tk),
        in_specs=[
            pl.BlockSpec((tm, tk), lambda i, k: (i, k)),
            pl.BlockSpec((tk, N), lambda i, k: (k, 0)),
            pl.BlockSpec((1, N), lambda i, k: (0, 0)),
            pl.BlockSpec((tm, N), lambda i, k: (i, 0)),
            pl.BlockSpec((1, N), lambda i, k: (0, 0)),
            pl.BlockSpec((1, N), lambda i, k: (0, 0)),
        ],
        out_specs=pl.BlockSpec((tm, N), lambda i, k: (i, 0)),
        scratch_shapes=[pltpu.VMEM((tm, N), jnp.float32)],
        compiler_params=pltpu.CompilerParams(
            dimension_semantics=("parallel", "arbitrary"),
            vmem_limit_bytes=_vmem_limit_bytes()),
    )(x, w, b.reshape(1, N).astype(jnp.float32), res,
      gamma.reshape(1, N).astype(jnp.float32),
      beta.reshape(1, N).astype(jnp.float32))


# ---------------------------------------------------------------------------
# Plain LayerNorm (embedding LN) tiled over rows; f32 in, bf16 out.
# ---------------------------------------------------------------------------
def _ln_kernel(x_ref, g_ref, b_ref, o_ref):
    x = x_ref[...].astype(jnp.float32)
    mean = jnp.mean(x, axis=-1, keepdims=True)
    c = x - mean
    var = jnp.mean(c * c, axis=-1, keepdims=True)
    inv = jax.lax.rsqrt(var + LN_EPS)
    o_ref[...] = (c * inv * g_ref[...] + b_ref[...]).astype(o_ref.dtype)


def layernorm(x, gamma, beta, *, tm=512):
    M, D = x.shape
    tm = _tile(M, tm, 8)
    return pl.pallas_call(
        _ln_kernel,
        out_shape=jax.ShapeDtypeStruct((M, D), jnp.bfloat16),
        grid=(M // tm,),
        in_specs=[
            pl.BlockSpec((tm, D), lambda i: (i, 0)),
            pl.BlockSpec((1, D), lambda i: (0, 0)),
            pl.BlockSpec((1, D), lambda i: (0, 0)),
        ],
        out_specs=pl.BlockSpec((tm, D), lambda i: (i, 0)),
        compiler_params=pltpu.CompilerParams(
            dimension_semantics=("parallel",),
            vmem_limit_bytes=_vmem_limit_bytes()),
    )(x, gamma.reshape(1, D).astype(jnp.float32),
      beta.reshape(1, D).astype(jnp.float32))


# ---------------------------------------------------------------------------
# Multi-head self-attention on (B*T, D) bf16 activations.
# Grid = (batch, head_group): each step handles a 128-lane-aligned group of
# heads (whole D if D <= 128) and stores a lane-dense (T, group_width) slab.
# ---------------------------------------------------------------------------
def _head_group_width(D, head_dim):
    if D <= 128:
        return D
    gw = head_dim
    while gw % 128 != 0:
        gw += head_dim
    if gw <= D and D % gw == 0:
        return gw
    return D


def _attention_kernel(q_ref, k_ref, v_ref, m_ref, o_ref, *,
                      scale, heads_per_group, head_dim):
    bias = m_ref[0]                                 # (1, T) f32 additive mask
    q_all = q_ref[...]
    k_all = k_ref[...]
    v_all = v_ref[...]
    # TODO(synk): for long sequences (T >~ 512) tile the query dim with an
    # online-softmax inner loop so (Tq, T) score tiles stay bounded.
    ctxs = []
    for h in range(heads_per_group):
        sl = slice(h * head_dim, (h + 1) * head_dim)
        # Fold 1/sqrt(d) into q (T*d muls instead of T*T on the score tile).
        q = (q_all[:, sl].astype(jnp.float32) * scale).astype(jnp.bfloat16)
        k = k_all[:, sl]
        v = v_all[:, sl]
        # QK^T via contracting dims (no explicit transpose), f32 accumulation.
        s = jax.lax.dot_general(q, k, (((1,), (1,)), ((), ())),
                                preferred_element_type=jnp.float32)
        s = s + bias
        s = s - jnp.max(s, axis=-1, keepdims=True)
        p = jnp.exp(s)
        denom = jnp.sum(p, axis=-1, keepdims=True)
        ctx = jnp.dot(p.astype(jnp.bfloat16), v,
                      preferred_element_type=jnp.float32)
        # Normalize the (T, d) context, not the (T, T) probability tile.
        ctx = ctx * pl.reciprocal(denom, approx=True)
        ctxs.append(ctx)
    out = ctxs[0] if len(ctxs) == 1 else jnp.concatenate(ctxs, axis=-1)
    o_ref[...] = out.astype(o_ref.dtype)


def attention(q, k, v, mask_bias, *, B, T, num_heads):
    M, D = q.shape                                  # M == B*T
    d = D // num_heads
    gw = _head_group_width(D, d)
    groups = D // gw
    kernel = functools.partial(
        _attention_kernel, scale=1.0 / math.sqrt(d),
        heads_per_group=gw // d, head_dim=d)
    x_spec = pl.BlockSpec((T, gw), lambda b, g: (b, g))
    return pl.pallas_call(
        kernel,
        out_shape=jax.ShapeDtypeStruct((M, D), jnp.bfloat16),
        grid=(B, groups),
        in_specs=[
            x_spec, x_spec, x_spec,
            pl.BlockSpec((1, 1, T), lambda b, g: (b, 0, 0)),
        ],
        out_specs=x_spec,
        compiler_params=pltpu.CompilerParams(
            dimension_semantics=("parallel", "parallel"),
            vmem_limit_bytes=_vmem_limit_bytes()),
    )(q, k, v, mask_bias)


# ---------------------------------------------------------------------------
# Parameter init (deterministic, synthetic — no checkpoint load).
# GEMM weights are stored in bf16 once; biases / LN params / head stay f32.
# ---------------------------------------------------------------------------
def init_params(key, *, vocab_size, D, n_layers, intermediate, max_pos,
                type_vocab, num_classes):
    def nrm(k, shape, dtype=jnp.float32):
        return (jax.random.normal(k, shape, jnp.float32) * 0.02).astype(dtype)

    keys = iter(jax.random.split(key, 16 + 16 * n_layers))
    params = {
        "word_emb": nrm(next(keys), (vocab_size, D)),
        "pos_emb": nrm(next(keys), (max_pos, D)),
        "tok_emb": nrm(next(keys), (type_vocab, D)),
        "emb_ln_g": jnp.ones((D,), jnp.float32),
        "emb_ln_b": jnp.zeros((D,), jnp.float32),
        "layers": [],
        "pool_w": nrm(next(keys), (D, D)),
        "pool_b": jnp.zeros((D,), jnp.float32),
        "cls_w": nrm(next(keys), (D, num_classes)),
        "cls_b": jnp.zeros((num_classes,), jnp.float32),
    }
    for _ in range(n_layers):
        layer = {
            "wq": nrm(next(keys), (D, D), jnp.bfloat16),
            "wk": nrm(next(keys), (D, D), jnp.bfloat16),
            "wv": nrm(next(keys), (D, D), jnp.bfloat16),
            "bq": jnp.zeros((D,), jnp.float32),
            "bk": jnp.zeros((D,), jnp.float32),
            "bv": jnp.zeros((D,), jnp.float32),
            "wo": nrm(next(keys), (D, D), jnp.bfloat16),
            "bo": jnp.zeros((D,), jnp.float32),
            "ln1_g": jnp.ones((D,), jnp.float32),
            "ln1_b": jnp.zeros((D,), jnp.float32),
            "wi": nrm(next(keys), (D, intermediate), jnp.bfloat16),
            "bi": jnp.zeros((intermediate,), jnp.float32),
            "wf": nrm(next(keys), (intermediate, D), jnp.bfloat16),
            "bf": jnp.zeros((D,), jnp.float32),
            "ln2_g": jnp.ones((D,), jnp.float32),
            "ln2_b": jnp.zeros((D,), jnp.float32),
        }
        params["layers"].append(layer)
    return params


# ---------------------------------------------------------------------------
# Forward pass: BERT encoder -> pooler ([CLS] + dense + tanh) -> classifier.
# ---------------------------------------------------------------------------
def transformer_classifier_forward(params, input_ids, attention_mask, *, num_heads):
    B, T = input_ids.shape
    D = params["word_emb"].shape[1]

    # Embeddings (gather in JAX; LN in Pallas).  Token-type hard-coded to 0,
    # matching BertModel's default when token_type_ids is None.
    emb = (params["word_emb"][input_ids]
           + params["pos_emb"][:T][None, :, :]
           + params["tok_emb"][0][None, None, :])
    x = layernorm(emb.reshape(B * T, D).astype(jnp.float32),
                  params["emb_ln_g"], params["emb_ln_b"])          # bf16

    if attention_mask is None:
        attention_mask = jnp.ones((B, T), jnp.int32)
    mask_bias = ((1.0 - attention_mask.astype(jnp.float32)) * -1e9).reshape(B, 1, T)

    for layer in params["layers"]:
        h = x  # residual (bf16)
        q, k, v = linear_qkv(x, layer["wq"], layer["wk"], layer["wv"],
                             layer["bq"], layer["bk"], layer["bv"])
        ctx = attention(q, k, v, mask_bias, B=B, T=T, num_heads=num_heads)
        # Attention output projection + residual + LayerNorm (fused epilogue).
        x = linear_residual_layernorm(ctx, layer["wo"], layer["bo"],
                                      h, layer["ln1_g"], layer["ln1_b"])
        # FFN: up-projection + GELU, then down-projection + residual + LN.
        inter = linear(x, layer["wi"], layer["bi"], activation="gelu")
        x = linear_residual_layernorm(inter, layer["wf"], layer["bf"],
                                      x, layer["ln2_g"], layer["ln2_b"])

    seq = x.reshape(B, T, D)
    cls_tok = seq[:, 0, :].astype(jnp.float32)                      # (B, D)
    # Pooler + classifier head in plain JAX: M=B, N=num_classes are sub-vreg,
    # a pallas_call here would be pure pipeline overhead.
    pooled = jnp.tanh(cls_tok @ params["pool_w"] + params["pool_b"])
    logits = pooled @ params["cls_w"] + params["cls_b"]             # (B, C)
    return logits


# ---------------------------------------------------------------------------
if __name__ == "__main__":
    # Small BERT-like config
    B, T = 2, 8
    VOCAB, D, HEADS, LAYERS, INTER = 100, 32, 4, 2, 64
    MAX_POS, TYPE_VOCAB, NUM_CLASSES = 16, 2, 3

    key = jax.random.PRNGKey(0)
    k_param, k_ids = jax.random.split(key)
    params = init_params(k_param, vocab_size=VOCAB, D=D, n_layers=LAYERS,
                         intermediate=INTER, max_pos=MAX_POS,
                         type_vocab=TYPE_VOCAB, num_classes=NUM_CLASSES)

    input_ids = jax.random.randint(k_ids, (B, T), 0, VOCAB, dtype=jnp.int32)
    attention_mask = jnp.array(
        [[1, 1, 1, 1, 1, 1, 1, 1],
         [1, 1, 1, 1, 1, 1, 0, 0]], dtype=jnp.int32)

    # TODO(synk): pretrained-checkpoint loading (BertModel.from_pretrained) has
    # no in-script equivalent; weights are synthetic. Dropout omitted (eval mode).
    logits = transformer_classifier_forward(
        params, input_ids, attention_mask, num_heads=HEADS)
    logits = jax.block_until_ready(logits)

    assert logits.shape == (B, NUM_CLASSES)
    assert bool(jnp.all(jnp.isfinite(logits)))
    print("KERNEL_OK")
</pallas_src>

<mosaic_0001>
module attributes {stable_mosaic.version = 11 : i64} {
  func.func @_ln_kernel(%arg0: i32, %arg1: memref<16x32xf32, #tpu.memory_space<vmem>>, %arg2: memref<1x32xf32, #tpu.memory_space<vmem>>, %arg3: memref<1x32xf32, #tpu.memory_space<vmem>>, %arg4: memref<16x32xbf16, #tpu.memory_space<vmem>>) attributes {dimension_semantics = [#tpu.dimension_semantics<parallel>], iteration_bounds = array<i64: 1>, scalar_prefetch = 0 : i64, scratch_operands = 0 : i64, tpu.core_type = #tpu.core_type<tc>, window_params = [{transform_indices = @transform_0, window_bounds = array<i64: 16, 32>}, {pipeline_mode = #tpu.pipeline_mode<synchronous>, transform_indices = @transform_1, window_bounds = array<i64: 1, 32>}, {pipeline_mode = #tpu.pipeline_mode<synchronous>, transform_indices = @transform_2, window_bounds = array<i64: 1, 32>}, {transform_indices = @transform_3, window_bounds = array<i64: 16, 32>}]} {
    %c0 = arith.constant 0 : index
    %c0_0 = arith.constant 0 : index
    %0 = vector.load %arg1[%c0, %c0_0] : memref<16x32xf32, #tpu.memory_space<vmem>>, vector<16x32xf32>
    %cst = arith.constant dense<0.000000e+00> : vector<16xf32>
    %1 = vector.multi_reduction <add>, %0, %cst [1] : vector<16x32xf32> to vector<16xf32>
    %2 = vector.shape_cast %1 : vector<16xf32> to vector<16x1xf32>
    %cst_1 = arith.constant 3.200000e+01 : f32
    %3 = vector.broadcast %cst_1 : f32 to vector<16x1xf32>
    %4 = arith.divf %2, %3 : vector<16x1xf32>
    %5 = vector.broadcast %4 : vector<16x1xf32> to vector<16x32xf32>
    %6 = arith.subf %0, %5 : vector<16x32xf32>
    %7 = arith.mulf %6, %6 : vector<16x32xf32>
    %cst_2 = arith.constant dense<0.000000e+00> : vector<16xf32>
    %8 = vector.multi_reduction <add>, %7, %cst_2 [1] : vector<16x32xf32> to vector<16xf32>
    %9 = vector.shape_cast %8 : vector<16xf32> to vector<16x1xf32>
    %cst_3 = arith.constant 3.200000e+01 : f32
    %10 = vector.broadcast %cst_3 : f32 to vector<16x1xf32>
    %11 = arith.divf %9, %10 : vector<16x1xf32>
    %cst_4 = arith.constant 9.99999996E-13 : f32
    %12 = vector.broadcast %cst_4 : f32 to vector<16x1xf32>
    %13 = arith.addf %11, %12 : vector<16x1xf32>
    %14 = math.rsqrt %13 : vector<16x1xf32>
    %15 = vector.broadcast %14 : vector<16x1xf32> to vector<16x32xf32>
    %16 = arith.mulf %6, %15 : vector<16x32xf32>
    %c0_5 = arith.constant 0 : index
    %c0_6 = arith.constant 0 : index
    %17 = vector.load %arg2[%c0_5, %c0_6] : memref<1x32xf32, #tpu.memory_space<vmem>>, vector<1x32xf32>
    %18 = vector.broadcast %17 : vector<1x32xf32> to vector<16x32xf32>
    %19 = arith.mulf %16, %18 : vector<16x32xf32>
    %c0_7 = arith.constant 0 : index
    %c0_8 = arith.constant 0 : index
    %20 = vector.load %arg3[%c0_7, %c0_8] : memref<1x32xf32, #tpu.memory_space<vmem>>, vector<1x32xf32>
    %21 = vector.broadcast %20 : vector<1x32xf32> to vector<16x32xf32>
    %22 = arith.addf %19, %21 : vector<16x32xf32>
    %23 = arith.truncf %22 : vector<16x32xf32> to vector<16x32xbf16>
    %c0_9 = arith.constant 0 : index
    %c0_10 = arith.constant 0 : index
    %24 = vector.load %arg4[%c0_9, %c0_10] : memref<16x32xbf16, #tpu.memory_space<vmem>>, vector<16x32xbf16>
    tpu.vector_store %arg4[%c0_9, %c0_10], %23 {strides = array<i32>} : memref<16x32xbf16, #tpu.memory_space<vmem>>, vector<16x32xbf16>,
    return
  }
  func.func @transform_0(%arg0: i32) -> (i32, i32) {
    %c0_i32 = arith.constant 0 : i32
    %c0_i32_0 = arith.constant 0 : i32
    return %arg0, %c0_i32 : i32, i32
  }
  func.func @transform_1(%arg0: i32) -> (i32, i32) {
    %c0_i32 = arith.constant 0 : i32
    %c0_i32_0 = arith.constant 0 : i32
    %c0_i32_1 = arith.constant 0 : i32
    return %c0_i32, %c0_i32_0 : i32, i32
  }
  func.func @transform_2(%arg0: i32) -> (i32, i32) {
    %c0_i32 = arith.constant 0 : i32
    %c0_i32_0 = arith.constant 0 : i32
    %c0_i32_1 = arith.constant 0 : i32
    return %c0_i32, %c0_i32_0 : i32, i32
  }
  func.func @transform_3(%arg0: i32) -> (i32, i32) {
    %c0_i32 = arith.constant 0 : i32
    %c0_i32_0 = arith.constant 0 : i32
    return %arg0, %c0_i32 : i32, i32
  }
}

</mosaic_0001>

<llo_original>
// kernel: tpu_custom_call.1
$region0: #{tpu_custom_call.1}
  #allocation0 [shape = 'u32[]', space=smem, size = 0x4, offset = 0x4, fixed_abs, tag = 'smem constant byte address 0x4 - core index']
  #allocation1 [shape = 'u32[144,128]{1,0:T(1,128)}', space=vmem, size = 0x12000, scoped, tag = 'internal scratch']
  %s0 = inlined_call_operand.hbm [shape: f32[16,32], index: 0, kind: input, shape index: {}]
  %s1 = inlined_call_operand.hbm [shape: f32[1,32], index: 1, kind: input, shape index: {}]
  %s2 = inlined_call_operand.hbm [shape: f32[1,32], index: 2, kind: input, shape index: {}]
  %s3 = inlined_call_operand.hbm [shape: bf16[16,32], index: 3, kind: output, shape index: {}]
  %s4 = sld [smem:[#allocation0]]
  $region34: #{tpu_custom_call.1} parent=0
    _
  %s6 = ssub.s32 1, %s4
  %s7 = scalar_select 0, %s6, %s4
  $region1: #{tpu_custom_call.1} parent=0
    #allocation2 [shape = 'u8[8192]{0}', space=vmem, size = 0x2000, scoped, tag = 'input window, operand 0, single buffered']
    #allocation3 [shape = 's32[1]{0}', space=sflag, size = 0x4, scoped, tag = 'scoped memory for tpu_custom_call.1']
    #allocation4 [shape = 's32[1]{0}', space=sflag, size = 0x4, scoped, tag = 'scoped memory for tpu_custom_call.1']
    #allocation5 [shape = 'u8[512]{0}', space=vmem, size = 0x400, scoped, tag = 'input window, operand 1, single buffered']
    #allocation6 [shape = 's32[1]{0}', space=sflag, size = 0x4, scoped, tag = 'scoped memory for tpu_custom_call.1']
    #allocation7 [shape = 'u8[512]{0}', space=vmem, size = 0x400, scoped, tag = 'input window, operand 2, single buffered']
    #allocation8 [shape = 'u8[4096]{0}', space=vmem, size = 0x1000, scoped, tag = 'output window, operand 0, single buffered']
    %8 = vsyncpa [#allocation3], 0
    %9 = vsyncpa [#allocation6], 0
    %10 = vsyncpa [#allocation4], 0
    // Predicated region
    $region2: #{tpu_custom_call.1} parent=1 // pred_check
      _
    $region3: #{tpu_custom_call.1} parent=1 // pred_check_branch
      %12 = sbr.rel (0) target = $region5
    $region4: #{tpu_custom_call.1} parent=1 // pred_region
      %s14 = ssub.s32 256, 256
      %15 = vsyncadd [#allocation3], %s14
      %s16 = sshll.u32 [#allocation2], 4
      %s17 = int_to_ptr.vmem [resolvable:$true] %s16
      %22 = dma.hbm_to_vmem [thread:$0]  %s0, 256, %s17, [#allocation3], 128, 128, 8
    $region5: #{tpu_custom_call.1} parent=1 // pred_fallthru
      _
    // Predicated region
    $region6: #{tpu_custom_call.1} parent=1 // pred_check
      _
    $region7: #{tpu_custom_call.1} parent=1 // pred_check_branch
      %24 = sbr.rel (0) target = $region9
    $region8: #{tpu_custom_call.1} parent=1 // pred_region
      %s26 = ssub.s32 16, 16
      %27 = vsyncadd [#allocation6], %s26
      %s29 = sshll.u32 [#allocation5], 4
      %s30 = int_to_ptr.vmem [resolvable:$true] %s29
      %32 = dma.hbm_to_vmem [thread:$0]  %s1, 16, %s30, [#allocation6]
    $region9: #{tpu_custom_call.1} parent=1 // pred_fallthru
      _
    // Predicated region
    $region10: #{tpu_custom_call.1} parent=1 // pred_check
      _
    $region11: #{tpu_custom_call.1} parent=1 // pred_check_branch
      %34 = sbr.rel (0) target = $region13
    $region12: #{tpu_custom_call.1} parent=1 // pred_region
      %s36 = ssub.s32 16, 16
      %37 = vsyncadd [#allocation6], %s36
      %s39 = sshll.u32 [#allocation7], 4
      %s40 = int_to_ptr.vmem [resolvable:$true] %s39
      %42 = dma.hbm_to_vmem [thread:$0]  %s2, 16, %s40, [#allocation6]
    $region13: #{tpu_custom_call.1} parent=1 // pred_fallthru
      _
    // Predicated region
    $region14: #{tpu_custom_call.1} parent=1 // pred_check
      _
    $region15: #{tpu_custom_call.1} parent=1 // pred_check_branch
      %44 = sbr.rel (0) target = $region17
    $region16: #{tpu_custom_call.1} parent=1 // pred_region
      %45 = dma.done [#allocation3], 256
    $region17: #{tpu_custom_call.1} parent=1 // pred_fallthru
      _
    // Predicated region
    $region18: #{tpu_custom_call.1} parent=1 // pred_check
      _
    $region19: #{tpu_custom_call.1} parent=1 // pred_check_branch
      %47 = sbr.rel (0) target = $region21
    $region20: #{tpu_custom_call.1} parent=1 // pred_region
      %48 = dma.done [#allocation6], 16
    $region21: #{tpu_custom_call.1} parent=1 // pred_fallthru
      _
    // Predicated region
    $region22: #{tpu_custom_call.1} parent=1 // pred_check
      _
    $region23: #{tpu_custom_call.1} parent=1 // pred_check_branch
      %50 = sbr.rel (0) target = $region25
    $region24: #{tpu_custom_call.1} parent=1 // pred_region
      %51 = dma.done [#allocation6], 16
    $region25: #{tpu_custom_call.1} parent=1 // pred_fallthru
      _
    %v52 = vld [vmem:[#allocation2] sm:$0xff]
    %v53 = vld [vmem:[#allocation2 + $0x8] sm:$0xff]
    %vm54 = vcmask 261120
    %v55 = vsel %vm54, %v52, 0.0
    %56 = vadd.xlane.f32.xlu0 %v55
    %v57 = vpop.xlane.xlu0 %56
    %v58 = vsel %vm54, %v53, 0.0
    %59 = vadd.xlane.f32.xlu0 %v58
    %v60 = vpop.xlane.xlu0 %59
    %v61 = vrcp.pop 32.0
    %v62 = vmul.f32 %v57, %v61
    %v63 = vmul.f32 %v60, %v61
    %v64 = vsub.f32 %v52, %v62
    %v65 = vsub.f32 %v53, %v63
    %v66 = vmul.f32 %v64, %v64
    %v67 = vmul.f32 %v65, %v65
    %v68 = vsel %vm54, %v66, 0.0
    %69 = vadd.xlane.f32.xlu0 %v68
    %v70 = vpop.xlane.xlu0 %69
    %v71 = vsel %vm54, %v67, 0.0
    %72 = vadd.xlane.f32.xlu0 %v71
    %v73 = vpop.xlane.xlu0 %72
    %v74 = vmul.f32 %v70, %v61
    %v75 = vmul.f32 %v73, %v61
    %v76 = vadd.f32 %v74, 1e-12
    %v77 = vadd.f32 %v75, 1e-12
    %v78 = vrsqrt.pop %v76
    %v79 = vrsqrt.pop %v77
    %v80 = vmul.f32 %v64, %v78
    %v81 = vmul.f32 %v65, %v79
    %v82 = vld [vmem:[#allocation5] sm:$0x1]
    %v84 = vlaneseq
    %v85 = vshrl.u32 %v84, 7
    %v86 = vsub.s32 0, %v85
    %v87 = vrot.slane %v82, %v86
    %v89 = vmul.f32 %v80, %v87
    %v90 = vmul.f32 %v81, %v87
    %v91 = vld [vmem:[#allocation7] sm:$0x1]
    %v93 = vlaneseq
    %v94 = vshrl.u32 %v93, 7
    %v95 = vsub.s32 0, %v94
    %v96 = vrot.slane %v91, %v95
    %v98 = vadd.f32 %v89, %v96
    %v99 = vadd.f32 %v90, %v96
    %v100 = vpack.c.bf16 %v99, %v98
    %v102 = vunpack.c.l.b16 %v100
    %v103 = vunpack.c.h.b16 %v100
    %v104 = vpack.c.b16 %v102, %v102
    %v105 = vpack.c.b16 %v103, %v103
    %vm108 = vcmask 257024
    %109 = vst.msk [vmem:[#allocation8] sm:$0xf] %vm108, %v104
    %110 = vst.msk [vmem:[#allocation8 + $0x4] sm:$0xf] %vm108, %v105
    // Predicated region
    $region26: #{tpu_custom_call.1} parent=1 // pred_check
      _
    $region27: #{tpu_custom_call.1} parent=1 // pred_check_branch
      %112 = sbr.rel (0) target = $region29
    $region28: #{tpu_custom_call.1} parent=1 // pred_region
      %s114 = ssub.s32 128, 128
      %115 = vsyncadd [#allocation4], %s114
      %s116 = sshll.u32 [#allocation8], 4
      %s117 = int_to_ptr.vmem [resolvable:$true] %s116
      %122 = dma.vmem_to_hbm [thread:$0]  %s117, 128, %s3, [#allocation4], 64, 64, 4
    $region29: #{tpu_custom_call.1} parent=1 // pred_fallthru
      _
    // Predicated region
    $region30: #{tpu_custom_call.1} parent=1 // pred_check
      _
    $region31: #{tpu_custom_call.1} parent=1 // pred_check_branch
      %124 = sbr.rel (0) target = $region33
    $region32: #{tpu_custom_call.1} parent=1 // pred_region
      %125 = dma.done [#allocation4], 128
    $region33: #{tpu_custom_call.1} parent=1 // pred_fallthru
      _
    %126 = vsyncpa [#allocation3], 1
    %127 = vsyncpa [#allocation6], 1
    %128 = vsyncpa [#allocation4], 1

</llo_original>
